<compile_context>
chip_gen: v5e
topology: v5e:2x2
jax: 0.10.0
libtpu: 0.0.40
codegen_flags: <defaults>
</compile_context>

<pallas_src>
import jax
import jax.numpy as jnp
from jax.experimental import pallas as pl
from jax.experimental.pallas import tpu as pltpu


def _round_up(x, m):
    return ((x + m - 1) // m) * m


# ---------------------------------------------------------------------------
# Kernel 1: batched input projection over all timesteps at once.
#   gx = x @ [W1i | W2i | W3i] + [b1 | b2 | b3]      (f32 accumulation/output)
# ---------------------------------------------------------------------------
def xproj_kernel(x_ref,    # [tm, Ip]      mm_dtype
                 wx_ref,   # [Ip, 3*Hp]    mm_dtype  (constant block -> VMEM-resident)
                 b_ref,    # [1, 3*Hp]     f32
                 o_ref):   # [tm, 3*Hp]    f32
    o_ref[...] = (
        jnp.dot(x_ref[...], wx_ref[...], preferred_element_type=jnp.float32)
        + b_ref[...]
    )


# ---------------------------------------------------------------------------
# Kernel 2: the recurrence.  One (batch-block, timestep) grid cell.
# ---------------------------------------------------------------------------
def gru_seq_kernel(gx_ref,    # [1, Bblk, 3*Hp] f32   (precomputed x-projection + bias)
                   h0_ref,    # [Bblk, Hp]      f32   (initial hidden)
                   wh_ref,    # [Hp, 2*Hp]      mm    ([W1h | W2h], VMEM-resident)
                   w3h_ref,   # [Hp, Hp]        mm    (W3h, hxo1 part of fc3)
                   out_ref,   # [Bblk, Hp]      f32   (final hidden state)
                   h_scr):    # VMEM scratch [Bblk, Hp] f32 (carried hidden state)
    t = pl.program_id(1)
    Hp = h_scr.shape[-1]

    @pl.when(t == 0)
    def _():
        h_scr[...] = h0_ref[...]

    gx = gx_ref[0]                      # [Bblk, 3*Hp] f32
    h = h_scr[...]                      # [Bblk, Hp]   f32
    h_mm = h.astype(wh_ref.dtype)       # matmul operand dtype only

    # One wide h-side dot for gates 1 & 2; gate 3 needs hxo1 (dependent dot).
    gh = jnp.dot(h_mm, wh_ref[...], preferred_element_type=jnp.float32)

    # Element-wise math stays in f32 (fast on v5e, exact accumulation everywhere).
    o1 = jax.nn.sigmoid(gx[:, :Hp] + gh[:, :Hp])
    hxo1 = h * o1
    o2 = jax.nn.sigmoid(gx[:, Hp:2 * Hp] + gh[:, Hp:])

    z3 = gx[:, 2 * Hp:] + jnp.dot(hxo1.astype(w3h_ref.dtype), w3h_ref[...],
                                  preferred_element_type=jnp.float32)
    o3 = jnp.tanh(z3)

    h_new = h + o2 * (o3 - h)           # == (1 - o2) * h + o2 * o3
    h_scr[...] = h_new

    @pl.when(t == pl.num_programs(1) - 1)
    def _():
        out_ref[...] = h_new


# ---------------------------------------------------------------------------
# Host-side parameter init + packing (done once, not per step / not in-kernel).
# ---------------------------------------------------------------------------
def init_params(key, input_size, output_size):
    """Deterministic nn.Linear-style init; weights stored transposed ([in, out])."""
    I, H = input_size, output_size
    bound = 1.0 / jnp.sqrt(jnp.float32(I + H))
    ks = jax.random.split(key, 6)

    def u(k, shape):
        return jax.random.uniform(k, shape, jnp.float32, -bound, bound)

    # fc1 / fc2 take cat(i, h): first I rows multiply i, next H rows multiply h.
    w1 = u(ks[0], (I + H, H)); b1 = u(ks[1], (1, H))
    w2 = u(ks[2], (I + H, H)); b2 = u(ks[3], (1, H))
    # fc3 takes cat(hxo1, i): first H rows multiply hxo1, next I rows multiply i.
    w3 = u(ks[4], (H + I, H)); b3 = u(ks[5], (1, H))

    w1i, w1h = w1[:I], w1[I:]
    w2i, w2h = w2[:I], w2[I:]
    w3h, w3i = w3[:H], w3[H:]
    return (w1i, w1h, b1, w2i, w2h, b2, w3h, w3i, b3)


def pack_params(params, input_size, output_size, mm_dtype=jnp.bfloat16):
    """Fuse + pad the Linear weights once on the host.

    fc(cat(a, b)) == a @ W_a + b @ W_b + bias, so every Linear is split into its
    i-part and h-part; the three x-side parts fuse into one [Ip, 3Hp] matrix and
    the h-side parts of fc1/fc2 into one [Hp, 2Hp] matrix.  Gate g occupies
    columns [g*Hp, g*Hp + H); padded columns are zero, which keeps the padded
    region of the hidden state exactly zero across timesteps.
    """
    (w1i, w1h, b1, w2i, w2h, b2, w3h, w3i, b3) = params
    I, H = input_size, output_size
    Ip = _round_up(I, 128)
    Hp = _round_up(H, 128)

    def pad(w, r, c):
        return jnp.pad(w, ((0, r - w.shape[0]), (0, c - w.shape[1])))

    wx = jnp.concatenate([pad(w1i, Ip, Hp), pad(w2i, Ip, Hp), pad(w3i, Ip, Hp)], axis=1)
    wh = jnp.concatenate([pad(w1h, Hp, Hp), pad(w2h, Hp, Hp)], axis=1)
    b_all = jnp.concatenate([pad(b1, 1, Hp), pad(b2, 1, Hp), pad(b3, 1, Hp)], axis=1)

    return dict(
        wx=wx.astype(mm_dtype),
        wh=wh.astype(mm_dtype),
        w3h=pad(w3h, Hp, Hp).astype(mm_dtype),
        b=b_all.astype(jnp.float32),
        I=I, H=H, Ip=Ip, Hp=Hp, mm_dtype=mm_dtype,
    )


# ---------------------------------------------------------------------------
# Wrappers.
# ---------------------------------------------------------------------------
def gru_sequence(x_seq, h0, packed):
    """Run the full recurrence h_{t+1} = GRU(x_t, h_t).

    x_seq: [T, B, I] float   h0: [B, H] float   ->   h_T: [B, H] float32
    """
    T, B, I = x_seq.shape
    H, Ip, Hp = packed["H"], packed["Ip"], packed["Hp"]
    assert I == packed["I"] and h0.shape == (B, H)
    mm_dtype = packed["mm_dtype"]

    # Sublane-align the batch; large batches tile so they shard across TCs.
    b_blk = min(_round_up(B, 8), 128)
    Bp = _round_up(B, b_blk)
    nb = Bp // b_blk

    x_p = jnp.zeros((T, Bp, Ip), mm_dtype).at[:, :B, :I].set(x_seq.astype(mm_dtype))
    h0_p = jnp.zeros((Bp, Hp), jnp.float32).at[:B, :H].set(h0.astype(jnp.float32))

    # ---- Pass 1: input-side projection of ALL timesteps in one big matmul. ----
    rows = T * Bp
    tm = min(_round_up(rows, 8), 512)
    rows_p = _round_up(rows, tm)
    x_flat = x_p.reshape(rows, Ip)
    if rows_p != rows:
        x_flat = jnp.zeros((rows_p, Ip), mm_dtype).at[:rows].set(x_flat)

    # NOTE(v7x): wx (Ip x 3Hp) is kept whole in VMEM here; for very large I/H,
    # tile the K / 3H dimensions or raise vmem_limit_bytes before approaching
    # v7x's 64 MiB VMEM.
    gx_all = pl.pallas_call(
        xproj_kernel,
        out_shape=jax.ShapeDtypeStruct((rows_p, 3 * Hp), jnp.float32),
        grid_spec=pltpu.PrefetchScalarGridSpec(
            num_scalar_prefetch=0,
            grid=(rows_p // tm,),
            in_specs=[
                pl.BlockSpec((tm, Ip), lambda m: (m, 0)),
                # Weights/bias: constant block index -> fetched once, VMEM-resident.
                pl.BlockSpec((Ip, 3 * Hp), lambda m: (0, 0)),
                pl.BlockSpec((1, 3 * Hp), lambda m: (0, 0)),
            ],
            out_specs=pl.BlockSpec((tm, 3 * Hp), lambda m: (m, 0)),
        ),
        compiler_params=pltpu.CompilerParams(
            dimension_semantics=("parallel",),
        ),
    )(x_flat, packed["wx"], packed["b"])

    if rows_p != rows:
        gx_all = gx_all[:rows]
    gx_all = gx_all.reshape(T, Bp, 3 * Hp)   # row-major reshape: free

    # ---- Pass 2: sequential recurrence, weights resident, h carried in VMEM. ----
    out = pl.pallas_call(
        gru_seq_kernel,
        out_shape=jax.ShapeDtypeStruct((Bp, Hp), jnp.float32),
        grid_spec=pltpu.PrefetchScalarGridSpec(
            num_scalar_prefetch=0,
            grid=(nb, T),
            in_specs=[
                # gx_t: new block each timestep -> auto double-buffered input DMA.
                pl.BlockSpec((1, b_blk, 3 * Hp), lambda b, t: (t, b, 0)),
                pl.BlockSpec((b_blk, Hp), lambda b, t: (b, 0)),
                # Recurrent weights: constant block index -> fetched once, resident.
                pl.BlockSpec((Hp, 2 * Hp), lambda b, t: (0, 0)),
                pl.BlockSpec((Hp, Hp), lambda b, t: (0, 0)),
            ],
            out_specs=pl.BlockSpec((b_blk, Hp), lambda b, t: (b, 0)),
            scratch_shapes=[pltpu.VMEM((b_blk, Hp), jnp.float32)],
        ),
        compiler_params=pltpu.CompilerParams(
            dimension_semantics=("parallel", "arbitrary"),
        ),
    )(gx_all, h0_p, packed["wh"], packed["w3h"])

    return out[:B, :H]


def gru_cell(i, h, packed):
    """Single forward step, identical semantics to Gru.forward(i, h)."""
    return gru_sequence(i[None, ...], h, packed)


# ---------------------------------------------------------------------------
# Pure-JAX reference (f32, matches the PyTorch module).
# ---------------------------------------------------------------------------
def gru_reference_step(i, h, params):
    (w1i, w1h, b1, w2i, w2h, b2, w3h, w3i, b3) = params
    o1 = jax.nn.sigmoid(i @ w1i + h @ w1h + b1)
    hxo1 = h * o1
    o2 = jax.nn.sigmoid(i @ w2i + h @ w2h + b2)
    o3 = jnp.tanh(hxo1 @ w3h + i @ w3i + b3)
    return (1.0 - o2) * h + o2 * o3


def gru_reference_seq(x_seq, h0, params):
    h = h0
    for t in range(x_seq.shape[0]):
        h = gru_reference_step(x_seq[t], h, params)
    return h


if __name__ == "__main__":
    input_size, output_size = 16, 32
    batch, seq_len = 2, 8

    key = jax.random.PRNGKey(0)
    k_p, k_x, k_h = jax.random.split(key, 3)

    params = init_params(k_p, input_size, output_size)
    x_seq = jax.random.normal(k_x, (seq_len, batch, input_size), jnp.float32)
    h0 = jax.random.normal(k_h, (batch, output_size), jnp.float32)

    # --- f32 matmul operands: tight semantic check vs. the pure-JAX reference.
    packed_f32 = pack_params(params, input_size, output_size, mm_dtype=jnp.float32)

    h1 = gru_cell(x_seq[0], h0, packed_f32)           # single Gru.forward step
    jax.block_until_ready(h1)
    h1_ref = gru_reference_step(x_seq[0], h0, params)
    assert h1.shape == (batch, output_size)
    assert jnp.allclose(h1, h1_ref, atol=1e-3, rtol=1e-3), "single-step mismatch"

    hT = gru_sequence(x_seq, h0, packed_f32)          # fused in-kernel recurrence
    jax.block_until_ready(hT)
    hT_ref = gru_reference_seq(x_seq, h0, params)
    assert jnp.allclose(hT, hT_ref, atol=1e-3, rtol=1e-3), "sequence (f32) mismatch"

    # --- bf16 matmul operands (v6e/v7x fast path); f32 accumulation + element-wise.
    packed_bf16 = pack_params(params, input_size, output_size, mm_dtype=jnp.bfloat16)
    hT_bf16 = gru_sequence(x_seq, h0, packed_bf16)
    jax.block_until_ready(hT_bf16)
    assert jnp.allclose(hT_bf16, hT_ref, atol=7e-2, rtol=7e-2), "sequence (bf16) mismatch"

    # TODO(synk): the PyTorch `train`/`evaluate` host loops (optimizer, loss, backward)
    # are driver code, not part of the forward pass, and are not translated.

    print("KERNEL_OK")
</pallas_src>

<mosaic_0001>
module attributes {stable_mosaic.version = 11 : i64} {
  func.func @xproj_kernel(%arg0: i32, %arg1: memref<8x128xf32, #tpu.memory_space<vmem>>, %arg2: memref<128x384xf32, #tpu.memory_space<vmem>>, %arg3: memref<1x384xf32, #tpu.memory_space<vmem>>, %arg4: memref<8x384xf32, #tpu.memory_space<vmem>>) attributes {dimension_semantics = [#tpu.dimension_semantics<parallel>], iteration_bounds = array<i64: 1>, scalar_prefetch = 0 : i64, scratch_operands = 0 : i64, tpu.core_type = #tpu.core_type<tc>, window_params = [{transform_indices = @transform_0, window_bounds = array<i64: 8, 128>}, {pipeline_mode = #tpu.pipeline_mode<synchronous>, transform_indices = @transform_1, window_bounds = array<i64: 128, 384>}, {pipeline_mode = #tpu.pipeline_mode<synchronous>, transform_indices = @transform_2, window_bounds = array<i64: 1, 384>}, {transform_indices = @transform_3, window_bounds = array<i64: 8, 384>}]} {
    %c0 = arith.constant 0 : index
    %c0_0 = arith.constant 0 : index
    %0 = vector.load %arg1[%c0, %c0_0] : memref<8x128xf32, #tpu.memory_space<vmem>>, vector<8x128xf32>
    %c0_1 = arith.constant 0 : index
    %c0_2 = arith.constant 0 : index
    %1 = vector.load %arg2[%c0_1, %c0_2] : memref<128x384xf32, #tpu.memory_space<vmem>>, vector<128x384xf32>
    %cst = arith.constant dense<0.000000e+00> : vector<8x384xf32>
    %2 = tpu.matmul %0, %1, %cst {dimension_numbers = #tpu.dot_dimension_numbers<[1], [0], [0], [1], [0, 0, 1, 1], [], []>} : vector<8x128xf32>, vector<128x384xf32>, vector<8x384xf32> -> vector<8x384xf32>
    %c0_3 = arith.constant 0 : index
    %c0_4 = arith.constant 0 : index
    %3 = vector.load %arg3[%c0_3, %c0_4] : memref<1x384xf32, #tpu.memory_space<vmem>>, vector<1x384xf32>
    %4 = vector.broadcast %3 : vector<1x384xf32> to vector<8x384xf32>
    %5 = arith.addf %2, %4 : vector<8x384xf32>
    %c0_5 = arith.constant 0 : index
    %c0_6 = arith.constant 0 : index
    %6 = vector.load %arg4[%c0_5, %c0_6] : memref<8x384xf32, #tpu.memory_space<vmem>>, vector<8x384xf32>
    tpu.vector_store %arg4[%c0_5, %c0_6], %5 {strides = array<i32>} : memref<8x384xf32, #tpu.memory_space<vmem>>, vector<8x384xf32>,
    return
  }
  func.func @transform_0(%arg0: i32) -> (i32, i32) {
    %c0_i32 = arith.constant 0 : i32
    %c0_i32_0 = arith.constant 0 : i32
    return %arg0, %c0_i32 : i32, i32
  }
  func.func @transform_1(%arg0: i32) -> (i32, i32) {
    %c0_i32 = arith.constant 0 : i32
    %c0_i32_0 = arith.constant 0 : i32
    %c0_i32_1 = arith.constant 0 : i32
    return %c0_i32, %c0_i32_0 : i32, i32
  }
  func.func @transform_2(%arg0: i32) -> (i32, i32) {
    %c0_i32 = arith.constant 0 : i32
    %c0_i32_0 = arith.constant 0 : i32
    %c0_i32_1 = arith.constant 0 : i32
    return %c0_i32, %c0_i32_0 : i32, i32
  }
  func.func @transform_3(%arg0: i32) -> (i32, i32) {
    %c0_i32 = arith.constant 0 : i32
    %c0_i32_0 = arith.constant 0 : i32
    return %arg0, %c0_i32 : i32, i32
  }
}

</mosaic_0001>

<llo_original>
// kernel: tpu_custom_call.1
$region0: #{tpu_custom_call.1}
  #allocation0 [shape = 'u32[]', space=smem, size = 0x4, offset = 0x4, fixed_abs, tag = 'smem constant byte address 0x4 - core index']
  #allocation1 [shape = 'u32[72,128]{1,0:T(1,128)}', space=vmem, size = 0x9000, scoped, tag = 'internal scratch']
  %s0 = inlined_call_operand.hbm [shape: f32[8,128], index: 0, kind: input, shape index: {}]
  %s1 = inlined_call_operand.hbm [shape: f32[128,384], index: 1, kind: input, shape index: {}]
  %s2 = inlined_call_operand.hbm [shape: f32[1,384], index: 2, kind: input, shape index: {}]
  %s3 = inlined_call_operand.hbm [shape: f32[8,384], index: 3, kind: output, shape index: {}]
  %s4 = sld [smem:[#allocation0]]
  $region34: #{tpu_custom_call.1} parent=0
    _
  %s6 = ssub.s32 1, %s4
  %s7 = scalar_select 0, %s6, %s4
  $region1: #{tpu_custom_call.1} parent=0
    #allocation2 [shape = 'u8[4096]{0}', space=vmem, size = 0x1000, scoped, tag = 'input window, operand 0, single buffered']
    #allocation3 [shape = 's32[1]{0}', space=sflag, size = 0x4, scoped, tag = 'scoped memory for tpu_custom_call.1']
    #allocation4 [shape = 's32[1]{0}', space=sflag, size = 0x4, scoped, tag = 'scoped memory for tpu_custom_call.1']
    #allocation5 [shape = 'u8[196608]{0}', space=vmem, size = 0x30000, scoped, tag = 'input window, operand 1, single buffered']
    #allocation6 [shape = 's32[1]{0}', space=sflag, size = 0x4, scoped, tag = 'scoped memory for tpu_custom_call.1']
    #allocation7 [shape = 'u8[1536]{0}', space=vmem, size = 0x800, scoped, tag = 'input window, operand 2, single buffered']
    #allocation8 [shape = 'u8[12288]{0}', space=vmem, size = 0x3000, scoped, tag = 'output window, operand 0, single buffered']
    %8 = vsyncpa [#allocation3], 0
    %9 = vsyncpa [#allocation6], 0
    %10 = vsyncpa [#allocation4], 0
    // Predicated region
    $region2: #{tpu_custom_call.1} parent=1 // pred_check
      _
    $region3: #{tpu_custom_call.1} parent=1 // pred_check_branch
      %12 = sbr.rel (0) target = $region5
    $region4: #{tpu_custom_call.1} parent=1 // pred_region
      %14 = vsyncadd [#allocation3], 0
      %s16 = sshll.u32 %s0, 4
      %s17 = int_to_ptr.hbm [resolvable:$true] %s16
      %s18 = sshll.u32 [#allocation2], 4
      %s19 = int_to_ptr.vmem [resolvable:$true] %s18
      %21 = dma.hbm_to_vmem [thread:$0]  %s17, 128, %s19, [#allocation3]
    $region5: #{tpu_custom_call.1} parent=1 // pred_fallthru
      _
    // Predicated region
    $region6: #{tpu_custom_call.1} parent=1 // pred_check
      _
    $region7: #{tpu_custom_call.1} parent=1 // pred_check_branch
      %23 = sbr.rel (0) target = $region9
    $region8: #{tpu_custom_call.1} parent=1 // pred_region
      %25 = vsyncadd [#allocation6], 0
      %s26 = sshll.u32 %s1, 4
      %s27 = int_to_ptr.hbm [resolvable:$true] %s26
      %s28 = sshll.u32 [#allocation5], 4
      %s29 = int_to_ptr.vmem [resolvable:$true] %s28
      %34 = dma.hbm_to_vmem [thread:$0]  %s27, 6144, %s29, [#allocation6], 384, 384, 24
    $region9: #{tpu_custom_call.1} parent=1 // pred_fallthru
      _
    // Predicated region
    $region10: #{tpu_custom_call.1} parent=1 // pred_check
      _
    $region11: #{tpu_custom_call.1} parent=1 // pred_check_branch
      %36 = sbr.rel (0) target = $region13
    $region12: #{tpu_custom_call.1} parent=1 // pred_region
      %38 = vsyncadd [#allocation6], 0
      %s40 = sshll.u32 %s2, 4
      %s41 = int_to_ptr.hbm [resolvable:$true] %s40
      %s42 = sshll.u32 [#allocation7], 4
      %s43 = int_to_ptr.vmem [resolvable:$true] %s42
      %45 = dma.hbm_to_vmem [thread:$0]  %s41, 48, %s43, [#allocation6]
    $region13: #{tpu_custom_call.1} parent=1 // pred_fallthru
      _
    // Predicated region
    $region14: #{tpu_custom_call.1} parent=1 // pred_check
      _
    $region15: #{tpu_custom_call.1} parent=1 // pred_check_branch
      %47 = sbr.rel (0) target = $region17
    $region16: #{tpu_custom_call.1} parent=1 // pred_region
      %49 = dma.done [#allocation3], 128
    $region17: #{tpu_custom_call.1} parent=1 // pred_fallthru
      _
    // Predicated region
    $region18: #{tpu_custom_call.1} parent=1 // pred_check
      _
    $region19: #{tpu_custom_call.1} parent=1 // pred_check_branch
      %51 = sbr.rel (0) target = $region21
    $region20: #{tpu_custom_call.1} parent=1 // pred_region
      %53 = dma.done [#allocation6], 6144
    $region21: #{tpu_custom_call.1} parent=1 // pred_fallthru
      _
    // Predicated region
    $region22: #{tpu_custom_call.1} parent=1 // pred_check
      _
    $region23: #{tpu_custom_call.1} parent=1 // pred_check_branch
      %55 = sbr.rel (0) target = $region25
    $region24: #{tpu_custom_call.1} parent=1 // pred_region
      %57 = dma.done [#allocation6], 48
    $region25: #{tpu_custom_call.1} parent=1 // pred_fallthru
      _
    %v58 = vld [vmem:[#allocation2] sm:$0xff]
    %v59 = vld [vmem:[#allocation5] sm:$0xff]
    %v60 = vld [vmem:[#allocation5 + $0x8] sm:$0xff]
    %v61 = vld [vmem:[#allocation5 + $0x10] sm:$0xff]
    %v62 = vld [vmem:[#allocation5 + $0x18] sm:$0xff]
    %v63 = vld [vmem:[#allocation5 + $0x20] sm:$0xff]
    %v64 = vld [vmem:[#allocation5 + $0x28] sm:$0xff]
    %v65 = vld [vmem:[#allocation5 + $0x30] sm:$0xff]
    %v66 = vld [vmem:[#allocation5 + $0x38] sm:$0xff]
    %v67 = vld [vmem:[#allocation5 + $0x40] sm:$0xff]
    %v68 = vld [vmem:[#allocation5 + $0x48] sm:$0xff]
    %v69 = vld [vmem:[#allocation5 + $0x50] sm:$0xff]
    %v70 = vld [vmem:[#allocation5 + $0x58] sm:$0xff]
    %v71 = vld [vmem:[#allocation5 + $0x60] sm:$0xff]
    %v72 = vld [vmem:[#allocation5 + $0x68] sm:$0xff]
    %v73 = vld [vmem:[#allocation5 + $0x70] sm:$0xff]
    %v74 = vld [vmem:[#allocation5 + $0x78] sm:$0xff]
    %v75 = vld [vmem:[#allocation5 + $0x80] sm:$0xff]
    %v76 = vld [vmem:[#allocation5 + $0x88] sm:$0xff]
    %v77 = vld [vmem:[#allocation5 + $0x90] sm:$0xff]
    %v78 = vld [vmem:[#allocation5 + $0x98] sm:$0xff]
    %v79 = vld [vmem:[#allocation5 + $0xa0] sm:$0xff]
    %v80 = vld [vmem:[#allocation5 + $0xa8] sm:$0xff]
    %v81 = vld [vmem:[#allocation5 + $0xb0] sm:$0xff]
    %v82 = vld [vmem:[#allocation5 + $0xb8] sm:$0xff]
    %v83 = vld [vmem:[#allocation5 + $0xc0] sm:$0xff]
    %v84 = vld [vmem:[#allocation5 + $0xc8] sm:$0xff]
    %v85 = vld [vmem:[#allocation5 + $0xd0] sm:$0xff]
    %v86 = vld [vmem:[#allocation5 + $0xd8] sm:$0xff]
    %v87 = vld [vmem:[#allocation5 + $0xe0] sm:$0xff]
    %v88 = vld [vmem:[#allocation5 + $0xe8] sm:$0xff]
    %v89 = vld [vmem:[#allocation5 + $0xf0] sm:$0xff]
    %v90 = vld [vmem:[#allocation5 + $0xf8] sm:$0xff]
    %v91 = vld [vmem:[#allocation5 + $0x100] sm:$0xff]
    %v92 = vld [vmem:[#allocation5 + $0x108] sm:$0xff]
    %v93 = vld [vmem:[#allocation5 + $0x110] sm:$0xff]
    %v94 = vld [vmem:[#allocation5 + $0x118] sm:$0xff]
    %v95 = vld [vmem:[#allocation5 + $0x120] sm:$0xff]
    %v96 = vld [vmem:[#allocation5 + $0x128] sm:$0xff]
    %v97 = vld [vmem:[#allocation5 + $0x130] sm:$0xff]
    %v98 = vld [vmem:[#allocation5 + $0x138] sm:$0xff]
    %v99 = vld [vmem:[#allocation5 + $0x140] sm:$0xff]
    %v100 = vld [vmem:[#allocation5 + $0x148] sm:$0xff]
    %v101 = vld [vmem:[#allocation5 + $0x150] sm:$0xff]
    %v102 = vld [vmem:[#allocation5 + $0x158] sm:$0xff]
    %v103 = vld [vmem:[#allocation5 + $0x160] sm:$0xff]
    %v104 = vld [vmem:[#allocation5 + $0x168] sm:$0xff]
    %v105 = vld [vmem:[#allocation5 + $0x170] sm:$0xff]
    %v106 = vld [vmem:[#allocation5 + $0x178] sm:$0xff]
    %v107 = vld [vmem:[#allocation7] sm:$0x7]
    %v109 = vperm.slane %v107, 0
    %v110 = vperm.slane %v107, 1
    %v111 = vperm.slane %v107, 2
    %115 = vmatpush.msra.mxu0 %v104
    %116 = vmatpush.msra.mxu0 %v101
    %117 = vmatpush.msra.mxu0 %v98
    %118 = vmatpush.msra.mxu0 %v95
    %119 = vmatpush.msra.mxu0 %v92
    %120 = vmatpush.msra.mxu0 %v89
    %121 = vmatpush.msra.mxu0 %v86
    %122 = vmatpush.msra.mxu0 %v83
    %123 = vmatpush.msra.mxu0 %v80
    %124 = vmatpush.msra.mxu0 %v77
    %125 = vmatpush.msra.mxu0 %v74
    %126 = vmatpush.msra.mxu0 %v71
    %127 = vmatpush.msra.mxu0 %v68
    %128 = vmatpush.msra.mxu0 %v65
    %129 = vmatpush.msra.mxu0 %v62
    %130 = vmatpush.msra.mxu0 %v59
    %131 = vmatmul.f32.gmra.mxu0 %v58
    %v132 = vpop.f32.mrf.mxu0
    %v133 = vadd.f32 %v109, %v132
    %134 = vdwg.mxu0
    %135 = vmatpush.msra.mxu0 %v105
    %136 = vmatpush.msra.mxu0 %v102
    %137 = vmatpush.msra.mxu0 %v99
    %138 = vmatpush.msra.mxu0 %v96
    %139 = vmatpush.msra.mxu0 %v93
    %140 = vmatpush.msra.mxu0 %v90
    %141 = vmatpush.msra.mxu0 %v87
    %142 = vmatpush.msra.mxu0 %v84
    %143 = vmatpush.msra.mxu0 %v81
    %144 = vmatpush.msra.mxu0 %v78
    %145 = vmatpush.msra.mxu0 %v75
    %146 = vmatpush.msra.mxu0 %v72
    %147 = vmatpush.msra.mxu0 %v69
    %148 = vmatpush.msra.mxu0 %v66
    %149 = vmatpush.msra.mxu0 %v63
    %150 = vmatpush.msra.mxu0 %v60
    %151 = vmatmul.f32.gmra.mxu0 %v58
    %v152 = vpop.f32.mrf.mxu0
    %v153 = vadd.f32 %v110, %v152
    %154 = vdwg.mxu0
    %155 = vmatpush.msra.mxu0 %v106
    %156 = vmatpush.msra.mxu0 %v103
    %157 = vmatpush.msra.mxu0 %v100
    %158 = vmatpush.msra.mxu0 %v97
    %159 = vmatpush.msra.mxu0 %v94
    %160 = vmatpush.msra.mxu0 %v91
    %161 = vmatpush.msra.mxu0 %v88
    %162 = vmatpush.msra.mxu0 %v85
    %163 = vmatpush.msra.mxu0 %v82
    %164 = vmatpush.msra.mxu0 %v79
    %165 = vmatpush.msra.mxu0 %v76
    %166 = vmatpush.msra.mxu0 %v73
    %167 = vmatpush.msra.mxu0 %v70
    %168 = vmatpush.msra.mxu0 %v67
    %169 = vmatpush.msra.mxu0 %v64
    %170 = vmatpush.msra.mxu0 %v61
    %171 = vmatmul.f32.gmra.mxu0 %v58
    %v172 = vpop.f32.mrf.mxu0
    %v173 = vadd.f32 %v111, %v172
    %174 = vdwg.mxu0
    %175 = vst [vmem:[#allocation8] sm:$0xff] %v133
    %176 = vst [vmem:[#allocation8 + $0x8] sm:$0xff] %v153
    %177 = vst [vmem:[#allocation8 + $0x10] sm:$0xff] %v173
    // Predicated region
    $region26: #{tpu_custom_call.1} parent=1 // pred_check
      _
    $region27: #{tpu_custom_call.1} parent=1 // pred_check_branch
      %179 = sbr.rel (0) target = $region29
    $region28: #{tpu_custom_call.1} parent=1 // pred_region
      %181 = vsyncadd [#allocation4], 0
      %s183 = sshll.u32 [#allocation8], 4
      %s184 = int_to_ptr.vmem [resolvable:$true] %s183
      %s185 = sshll.u32 %s3, 4
      %s186 = int_to_ptr.hbm [resolvable:$true] %s185
      %188 = dma.vmem_to_hbm [thread:$0]  %s184, 384, %s186, [#allocation4]
    $region29: #{tpu_custom_call.1} parent=1 // pred_fallthru
      _
    // Predicated region
    $region30: #{tpu_custom_call.1} parent=1 // pred_check
      _
    $region31: #{tpu_custom_call.1} parent=1 // pred_check_branch
      %190 = sbr.rel (0) target = $region33
    $region32: #{tpu_custom_call.1} parent=1 // pred_region
      %192 = dma.done [#allocation4], 384
    $region33: #{tpu_custom_call.1} parent=1 // pred_fallthru
      _
    %193 = vsyncpa [#allocation3], 1
    %194 = vsyncpa [#allocation6], 1
    %195 = vsyncpa [#allocation4], 1

</llo_original>
